<compile_context>
chip_gen: v7x
topology: tpu7x:2x2x1
jax: 0.10.0
libtpu: 0.0.40
codegen_flags: <defaults>
</compile_context>

<pallas_src>
import functools

import jax
import jax.numpy as jnp
from jax.experimental import pallas as pl
from jax.experimental.pallas import tpu as pltpu

LANES = 128  # TPU vreg lane width; output lane-padding target.


def mlp_kernel(x_ref, w1_ref, b1_ref, w2_ref, b2_ref,
               logits_ref, probs_ref, *, n_actions):
    # hidden = relu(x @ W1 + b1)
    h = jnp.dot(x_ref[...], w1_ref[...], preferred_element_type=jnp.float32)
    h = jnp.maximum(h + b1_ref[...], 0.0)

    # logits = hidden @ W2 + b2  (lane-padded to 128; padded lanes are exactly
    # zero because W2/b2 are zero-padded, so slicing in the wrapper is exact).
    o = jnp.dot(h, w2_ref[...], preferred_element_type=jnp.float32) + b2_ref[...]
    logits_ref[...] = o.astype(logits_ref.dtype)

    # Fused softmax epilogue over the real action lanes (policy-step probs).
    lane = jax.lax.broadcasted_iota(jnp.int32, o.shape, dimension=1)
    valid = lane < n_actions
    masked = jnp.where(valid, o, -jnp.inf)
    m = jnp.max(masked, axis=-1, keepdims=True)
    e = jnp.where(valid, jnp.exp(masked - m), 0.0)
    denom = jnp.sum(e, axis=-1, keepdims=True)
    probs_ref[...] = (e * pl.reciprocal(denom, approx=True)).astype(probs_ref.dtype)
    # TODO(synk): action *sampling* (pltpu.prng_*) could also be fused here,
    # but the module spec only defines the logits forward pass.


def net_forward(x, w1, b1, w2, b2, *, tile_m=256):
    """Fused forward pass of Net.

    x: [B, obs_size] float32.
    Returns (logits [B, n_actions], probs [B, n_actions]); `logits` matches
    the PyTorch Net.forward output, `probs` is softmax(logits) computed in
    the same kernel.
    """
    B, obs_size = x.shape
    hidden = w1.shape[1]
    n_actions = w2.shape[1]

    # Lane-dense padding of the second layer: N n_actions -> 128.
    w2p = jnp.zeros((hidden, LANES), w2.dtype).at[:, :n_actions].set(w2)
    b2p = jnp.zeros((1, LANES), b2.dtype).at[0, :n_actions].set(b2)
    b1r = b1.reshape(1, hidden)

    # Batch tiling: single block for small B (inference path), 256-row tiles
    # for the large training-time batches produced by the CE method.
    if B <= tile_m:
        tm, Bp = B, B
    else:
        tm = tile_m
        Bp = pl.cdiv(B, tm) * tm
    xp = x if Bp == B else jnp.zeros((Bp, obs_size), x.dtype).at[:B].set(x)
    grid = (Bp // tm,)

    kernel = functools.partial(mlp_kernel, n_actions=n_actions)
    logits_p, probs_p = pl.pallas_call(
        kernel,
        out_shape=(
            jax.ShapeDtypeStruct((Bp, LANES), jnp.float32),
            jax.ShapeDtypeStruct((Bp, LANES), jnp.float32),
        ),
        grid=grid,
        in_specs=[
            pl.BlockSpec((tm, obs_size), lambda i: (i, 0)),      # x tile
            pl.BlockSpec((obs_size, hidden), lambda i: (0, 0)),  # W1 (resident)
            pl.BlockSpec((1, hidden), lambda i: (0, 0)),         # b1 (resident)
            pl.BlockSpec((hidden, LANES), lambda i: (0, 0)),     # W2 padded (resident)
            pl.BlockSpec((1, LANES), lambda i: (0, 0)),          # b2 padded (resident)
        ],
        out_specs=(
            pl.BlockSpec((tm, LANES), lambda i: (i, 0)),
            pl.BlockSpec((tm, LANES), lambda i: (i, 0)),
        ),
        compiler_params=pltpu.CompilerParams(
            dimension_semantics=("parallel",)),
    )(xp, w1, b1r, w2p, b2p)

    logits = logits_p[:B, :n_actions]
    probs = probs_p[:B, :n_actions]
    return logits, probs


def init_params(key, obs_size, hidden_size, n_actions):
    """Deterministic init mimicking PyTorch Linear (uniform +-1/sqrt(fan_in))."""
    k1, k2, k3, k4 = jax.random.split(key, 4)
    lim1 = 1.0 / jnp.sqrt(obs_size)
    lim2 = 1.0 / jnp.sqrt(hidden_size)
    w1 = jax.random.uniform(k1, (obs_size, hidden_size), jnp.float32, -lim1, lim1)
    b1 = jax.random.uniform(k2, (hidden_size,), jnp.float32, -lim1, lim1)
    w2 = jax.random.uniform(k3, (hidden_size, n_actions), jnp.float32, -lim2, lim2)
    b2 = jax.random.uniform(k4, (n_actions,), jnp.float32, -lim2, lim2)
    return w1, b1, w2, b2


if __name__ == "__main__":
    # CartPole-like sizes: obs_size=4, hidden_size=128, n_actions=2, batch=16.
    obs_size, hidden_size, n_actions, batch = 4, 128, 2, 16

    key = jax.random.PRNGKey(0)
    kx, kp = jax.random.split(key)
    x = jax.random.normal(kx, (batch, obs_size), dtype=jnp.float32)
    w1, b1, w2, b2 = init_params(kp, obs_size, hidden_size, n_actions)

    logits, probs = net_forward(x, w1, b1, w2, b2)
    jax.block_until_ready((logits, probs))

    # Pure-JAX reference check of forward semantics.
    ref_logits = jnp.maximum(x @ w1 + b1, 0.0) @ w2 + b2
    ref_probs = jax.nn.softmax(ref_logits, axis=-1)
    assert logits.shape == (batch, n_actions)
    assert probs.shape == (batch, n_actions)
    assert jnp.allclose(logits, ref_logits, atol=1e-5, rtol=1e-5)
    assert jnp.allclose(probs, ref_probs, atol=2e-3, rtol=2e-3)

    # Also exercise the tiled training-path (B > 256) to validate the grid.
    big_x = jax.random.normal(kx, (600, obs_size), dtype=jnp.float32)
    big_logits, _ = net_forward(big_x, w1, b1, w2, b2)
    jax.block_until_ready(big_logits)
    big_ref = jnp.maximum(big_x @ w1 + b1, 0.0) @ w2 + b2
    assert jnp.allclose(big_logits, big_ref, atol=1e-4, rtol=1e-4)

    print("KERNEL_OK")
</pallas_src>

<mosaic_0001>
module attributes {stable_mosaic.version = 11 : i64} {
  func.func @mlp_kernel(%arg0: i32, %arg1: memref<16x4xf32, #tpu.memory_space<vmem>>, %arg2: memref<4x128xf32, #tpu.memory_space<vmem>>, %arg3: memref<1x128xf32, #tpu.memory_space<vmem>>, %arg4: memref<128x128xf32, #tpu.memory_space<vmem>>, %arg5: memref<1x128xf32, #tpu.memory_space<vmem>>, %arg6: memref<16x128xf32, #tpu.memory_space<vmem>>, %arg7: memref<16x128xf32, #tpu.memory_space<vmem>>) attributes {dimension_semantics = [#tpu.dimension_semantics<parallel>], iteration_bounds = array<i64: 1>, scalar_prefetch = 0 : i64, scratch_operands = 0 : i64, tpu.core_type = #tpu.core_type<tc>, window_params = [{transform_indices = @transform_0, window_bounds = array<i64: 16, 4>}, {pipeline_mode = #tpu.pipeline_mode<synchronous>, transform_indices = @transform_1, window_bounds = array<i64: 4, 128>}, {pipeline_mode = #tpu.pipeline_mode<synchronous>, transform_indices = @transform_2, window_bounds = array<i64: 1, 128>}, {pipeline_mode = #tpu.pipeline_mode<synchronous>, transform_indices = @transform_3, window_bounds = array<i64: 128, 128>}, {pipeline_mode = #tpu.pipeline_mode<synchronous>, transform_indices = @transform_4, window_bounds = array<i64: 1, 128>}, {transform_indices = @transform_5, window_bounds = array<i64: 16, 128>}, {transform_indices = @transform_6, window_bounds = array<i64: 16, 128>}]} {
    %c0 = arith.constant 0 : index
    %c0_0 = arith.constant 0 : index
    %0 = vector.load %arg1[%c0, %c0_0] : memref<16x4xf32, #tpu.memory_space<vmem>>, vector<16x4xf32>
    %c0_1 = arith.constant 0 : index
    %c0_2 = arith.constant 0 : index
    %1 = vector.load %arg2[%c0_1, %c0_2] : memref<4x128xf32, #tpu.memory_space<vmem>>, vector<4x128xf32>
    %cst = arith.constant dense<0.000000e+00> : vector<16x128xf32>
    %2 = tpu.matmul %0, %1, %cst {dimension_numbers = #tpu.dot_dimension_numbers<[1], [0], [0], [1], [0, 0, 1, 1], [], []>} : vector<16x4xf32>, vector<4x128xf32>, vector<16x128xf32> -> vector<16x128xf32>
    %c0_3 = arith.constant 0 : index
    %c0_4 = arith.constant 0 : index
    %3 = vector.load %arg3[%c0_3, %c0_4] : memref<1x128xf32, #tpu.memory_space<vmem>>, vector<1x128xf32>
    %4 = vector.broadcast %3 : vector<1x128xf32> to vector<16x128xf32>
    %5 = arith.addf %2, %4 : vector<16x128xf32>
    %cst_5 = arith.constant 0.000000e+00 : f32
    %6 = vector.broadcast %cst_5 : f32 to vector<16x128xf32>
    %7 = arith.maximumf %5, %6 : vector<16x128xf32>
    %c0_6 = arith.constant 0 : index
    %c0_7 = arith.constant 0 : index
    %8 = vector.load %arg4[%c0_6, %c0_7] : memref<128x128xf32, #tpu.memory_space<vmem>>, vector<128x128xf32>
    %cst_8 = arith.constant dense<0.000000e+00> : vector<16x128xf32>
    %9 = tpu.matmul %7, %8, %cst_8 {dimension_numbers = #tpu.dot_dimension_numbers<[1], [0], [0], [1], [0, 0, 1, 1], [], []>} : vector<16x128xf32>, vector<128x128xf32>, vector<16x128xf32> -> vector<16x128xf32>
    %c0_9 = arith.constant 0 : index
    %c0_10 = arith.constant 0 : index
    %10 = vector.load %arg5[%c0_9, %c0_10] : memref<1x128xf32, #tpu.memory_space<vmem>>, vector<1x128xf32>
    %11 = vector.broadcast %10 : vector<1x128xf32> to vector<16x128xf32>
    %12 = arith.addf %9, %11 : vector<16x128xf32>
    %c0_11 = arith.constant 0 : index
    %c0_12 = arith.constant 0 : index
    %13 = vector.load %arg6[%c0_11, %c0_12] : memref<16x128xf32, #tpu.memory_space<vmem>>, vector<16x128xf32>
    tpu.vector_store %arg6[%c0_11, %c0_12], %12 {strides = array<i32>} : memref<16x128xf32, #tpu.memory_space<vmem>>, vector<16x128xf32>,
    %14 = tpu.iota {dimensions = array<i32: 1>} : vector<16x128xi32>
    %c2_i32 = arith.constant 2 : i32
    %15 = vector.broadcast %c2_i32 : i32 to vector<16x128xi32>
    %16 = arith.cmpi slt, %14, %15 : vector<16x128xi32>
    %cst_13 = arith.constant 0xFF800000 : f32
    %17 = vector.broadcast %cst_13 : f32 to vector<16x128xf32>
    %18 = arith.select %16, %12, %17 : vector<16x128xi1>, vector<16x128xf32>
    %cst_14 = arith.constant dense<0xFF800000> : vector<16xf32>
    %19 = vector.multi_reduction <maximumf>, %18, %cst_14 [1] : vector<16x128xf32> to vector<16xf32>
    %20 = vector.shape_cast %19 : vector<16xf32> to vector<16x1xf32>
    %21 = vector.broadcast %20 : vector<16x1xf32> to vector<16x128xf32>
    %22 = arith.subf %18, %21 : vector<16x128xf32>
    %23 = math.exp %22 : vector<16x128xf32>
    %cst_15 = arith.constant 0.000000e+00 : f32
    %24 = vector.broadcast %cst_15 : f32 to vector<16x128xf32>
    %25 = arith.select %16, %23, %24 : vector<16x128xi1>, vector<16x128xf32>
    %cst_16 = arith.constant dense<0.000000e+00> : vector<16xf32>
    %26 = vector.multi_reduction <add>, %25, %cst_16 [1] : vector<16x128xf32> to vector<16xf32>
    %27 = vector.shape_cast %26 : vector<16xf32> to vector<16x1xf32>
    %28 = tpu.reciprocal %27 {approx = true} : vector<16x1xf32> -> vector<16x1xf32>
    %29 = vector.broadcast %28 : vector<16x1xf32> to vector<16x128xf32>
    %30 = arith.mulf %25, %29 : vector<16x128xf32>
    %c0_17 = arith.constant 0 : index
    %c0_18 = arith.constant 0 : index
    %31 = vector.load %arg7[%c0_17, %c0_18] : memref<16x128xf32, #tpu.memory_space<vmem>>, vector<16x128xf32>
    tpu.vector_store %arg7[%c0_17, %c0_18], %30 {strides = array<i32>} : memref<16x128xf32, #tpu.memory_space<vmem>>, vector<16x128xf32>,
    return
  }
  func.func @transform_0(%arg0: i32) -> (i32, i32) {
    %c0_i32 = arith.constant 0 : i32
    %c0_i32_0 = arith.constant 0 : i32
    return %arg0, %c0_i32 : i32, i32
  }
  func.func @transform_1(%arg0: i32) -> (i32, i32) {
    %c0_i32 = arith.constant 0 : i32
    %c0_i32_0 = arith.constant 0 : i32
    %c0_i32_1 = arith.constant 0 : i32
    return %c0_i32, %c0_i32_0 : i32, i32
  }
  func.func @transform_2(%arg0: i32) -> (i32, i32) {
    %c0_i32 = arith.constant 0 : i32
    %c0_i32_0 = arith.constant 0 : i32
    %c0_i32_1 = arith.constant 0 : i32
    return %c0_i32, %c0_i32_0 : i32, i32
  }
  func.func @transform_3(%arg0: i32) -> (i32, i32) {
    %c0_i32 = arith.constant 0 : i32
    %c0_i32_0 = arith.constant 0 : i32
    %c0_i32_1 = arith.constant 0 : i32
    return %c0_i32, %c0_i32_0 : i32, i32
  }
  func.func @transform_4(%arg0: i32) -> (i32, i32) {
    %c0_i32 = arith.constant 0 : i32
    %c0_i32_0 = arith.constant 0 : i32
    %c0_i32_1 = arith.constant 0 : i32
    return %c0_i32, %c0_i32_0 : i32, i32
  }
  func.func @transform_5(%arg0: i32) -> (i32, i32) {
    %c0_i32 = arith.constant 0 : i32
    %c0_i32_0 = arith.constant 0 : i32
    return %arg0, %c0_i32 : i32, i32
  }
  func.func @transform_6(%arg0: i32) -> (i32, i32) {
    %c0_i32 = arith.constant 0 : i32
    %c0_i32_0 = arith.constant 0 : i32
    return %arg0, %c0_i32 : i32, i32
  }
}

</mosaic_0001>

<llo_original>
// kernel: tpu_custom_call.1
$region0: #{tpu_custom_call.1}
  #allocation0 [shape = 'u32[]', space=smem, size = 0x4, offset = 0x4, fixed_abs, tag = 'smem constant byte address 0x4 - core index']
  #allocation1 [shape = 'u32[144,128]{1,0:T(1,128)}', space=vmem, size = 0x12000, scoped, tag = 'internal scratch']
  %s0 = inlined_call_operand.vmem [shape: f32[16,4], index: 0, kind: input, shape index: {}]
  %s1 = inlined_call_operand.vmem [shape: f32[4,128], index: 1, kind: input, shape index: {}]
  %s2 = inlined_call_operand.vmem [shape: f32[1,128], index: 2, kind: input, shape index: {}]
  %s3 = inlined_call_operand.hbm [shape: f32[128,128], index: 3, kind: input, shape index: {}]
  %s4 = inlined_call_operand.vmem [shape: f32[1,128], index: 4, kind: input, shape index: {}]
  %s5 = inlined_call_operand.hbm [shape: f32[16,128], index: 5, kind: output, shape index: {0}]
  %s6 = inlined_call_operand.hbm [shape: f32[16,128], index: 6, kind: output, shape index: {1}]
  %7 = xla_tuple %s5, %s6
  %s8 = sld [smem:[#allocation0]]
  $region42: #{tpu_custom_call.1} parent=0
    _
  %s10 = ssub.s32 1, %s8
  %s11 = scalar_select 0, %s10, %s8
  $region1: #{tpu_custom_call.1} parent=0
    #allocation2 [shape = 'u8[65536]{0}', space=vmem, size = 0x10000, scoped, tag = 'input window, operand 3, single buffered']
    #allocation3 [shape = 's32[1]{0}', space=sflag, size = 0x4, scoped, tag = 'scoped memory for tpu_custom_call.1']
    #allocation4 [shape = 's32[1]{0}', space=sflag, size = 0x4, scoped, tag = 'scoped memory for tpu_custom_call.1']
    #allocation5 [shape = 'u8[8192]{0}', space=vmem, size = 0x2000, scoped, tag = 'output window, operand 0, single buffered']
    #allocation6 [shape = 'u8[8192]{0}', space=vmem, size = 0x2000, scoped, tag = 'output window, operand 1, single buffered']
    #allocation7 [shape = 's32[1]{0}', space=sflag, size = 0x4, scoped, tag = 'scoped memory for tpu_custom_call.1']
    %12 = vsyncpa [#allocation3], 0
    %13 = vsyncpa [#allocation4], 0
    %14 = vsyncpa [#allocation7], 0
    // Predicated region
    $region2: #{tpu_custom_call.1} parent=1 // pred_check
      _
    $region3: #{tpu_custom_call.1} parent=1 // pred_check_branch
      %16 = sbr.rel (0) target = $region5
    $region4: #{tpu_custom_call.1} parent=1 // pred_region
      _
    $region5: #{tpu_custom_call.1} parent=1 // pred_fallthru
      _
    // Predicated region
    $region6: #{tpu_custom_call.1} parent=1 // pred_check
      _
    $region7: #{tpu_custom_call.1} parent=1 // pred_check_branch
      %18 = sbr.rel (0) target = $region9
    $region8: #{tpu_custom_call.1} parent=1 // pred_region
      _
    $region9: #{tpu_custom_call.1} parent=1 // pred_fallthru
      _
    // Predicated region
    $region10: #{tpu_custom_call.1} parent=1 // pred_check
      _
    $region11: #{tpu_custom_call.1} parent=1 // pred_check_branch
      %20 = sbr.rel (0) target = $region13
    $region12: #{tpu_custom_call.1} parent=1 // pred_region
      _
    $region13: #{tpu_custom_call.1} parent=1 // pred_fallthru
      _
    // Predicated region
    $region14: #{tpu_custom_call.1} parent=1 // pred_check
      _
    $region15: #{tpu_custom_call.1} parent=1 // pred_check_branch
      %22 = sbr.rel (0) target = $region17
    $region16: #{tpu_custom_call.1} parent=1 // pred_region
      %s24 = ssub.s32 2048, 2048
      %25 = vsyncadd [#allocation3], %s24
      %s26 = sshll.u32 [#allocation2], 4
      %s27 = int_to_ptr.vmem [resolvable:$true] %s26
      %32 = dma.hbm_to_vmem [thread:$0]  %s3, 2048, %s27, [#allocation3], 128, 128, 8
    $region17: #{tpu_custom_call.1} parent=1 // pred_fallthru
      _
    // Predicated region
    $region18: #{tpu_custom_call.1} parent=1 // pred_check
      _
    $region19: #{tpu_custom_call.1} parent=1 // pred_check_branch
      %34 = sbr.rel (0) target = $region21
    $region20: #{tpu_custom_call.1} parent=1 // pred_region
      _
    $region21: #{tpu_custom_call.1} parent=1 // pred_fallthru
      _
    // Predicated region
    $region22: #{tpu_custom_call.1} parent=1 // pred_check
      _
    $region23: #{tpu_custom_call.1} parent=1 // pred_check_branch
      %36 = sbr.rel (0) target = $region25
    $region24: #{tpu_custom_call.1} parent=1 // pred_region
      %37 = dma.done [#allocation3], 2048
    $region25: #{tpu_custom_call.1} parent=1 // pred_fallthru
      _
    %v38 = vld [vmem:[%s0] sm:$0xff]
    %v39 = vld [vmem:[%s0 + $0x8] sm:$0xff]
    %v40 = vld [vmem:[%s1] sm:$0xf]
    %v41 = vld [vmem:[%s2] sm:$0x1]
    %v43 = vlaneseq
    %v44 = vshrl.u32 %v43, 7
    %v45 = vsub.s32 0, %v44
    %v46 = vrot.slane %v41, %v45
    %vm48 = vcmask 31744
    %v50 = vsel %vm48, %v38, 0
    %v53 = vsel %vm48, %v39, 0
    %vm55 = vcmask 1043456
    %v57 = vsel %vm55, %v40, 0
    %59 = vmatprep.subr.mxu0 0.0
    %60 = vmatpush1.msra.mxu0 %v57
    %61 = vmatprep.subr.mxu0 0.0
    %62 = vmatpush1.msra.mxu0 0.0
    %63 = vmatprep.subr.mxu0 0.0
    %64 = vmatpush1.msra.mxu0 0.0
    %65 = vmatprep.subr.mxu0 0.0
    %66 = vmatpush1.msra.mxu0 0.0
    %67 = vmatprep.subr.mxu0 0.0
    %68 = vmatpush1.msra.mxu0 0.0
    %69 = vmatprep.subr.mxu0 0.0
    %70 = vmatpush1.msra.mxu0 0.0
    %71 = vmatprep.subr.mxu0 0.0
    %72 = vmatpush1.msra.mxu0 0.0
    %73 = vmatprep.subr.mxu0 0.0
    %74 = vmatpush1.msra.mxu0 0.0
    %75 = vmatprep.subr.mxu0 0.0
    %76 = vmatpush1.msra.mxu0 0.0
    %77 = vmatprep.subr.mxu0 0.0
    %78 = vmatpush1.msra.mxu0 0.0
    %79 = vmatprep.subr.mxu0 0.0
    %80 = vmatpush1.msra.mxu0 0.0
    %81 = vmatprep.subr.mxu0 0.0
    %82 = vmatpush1.msra.mxu0 0.0
    %83 = vmatprep.subr.mxu0 0.0
    %84 = vmatpush1.msra.mxu0 0.0
    %85 = vmatprep.subr.mxu0 0.0
    %86 = vmatpush1.msra.mxu0 0.0
    %87 = vmatprep.subr.mxu0 0.0
    %88 = vmatpush1.msra.mxu0 0.0
    %89 = vmatprep.subr.mxu0 0.0
    %90 = vmatpush1.msra.mxu0 0.0
    %91 = vmatprep.subr.mxu0 0.0
    %92 = vmatpush1.msra.mxu0 0.0
    %93 = vmatprep.subr.mxu0 0.0
    %94 = vmatpush1.msra.mxu0 0.0
    %95 = vmatprep.subr.mxu0 0.0
    %96 = vmatpush1.msra.mxu0 0.0
    %97 = vmatprep.subr.mxu0 0.0
    %98 = vmatpush1.msra.mxu0 0.0
    %99 = vmatprep.subr.mxu0 0.0
    %100 = vmatpush1.msra.mxu0 0.0
    %101 = vmatprep.subr.mxu0 0.0
    %102 = vmatpush1.msra.mxu0 0.0
    %103 = vmatprep.subr.mxu0 0.0
    %104 = vmatpush1.msra.mxu0 0.0
    %105 = vmatprep.subr.mxu0 0.0
    %106 = vmatpush1.msra.mxu0 0.0
    %107 = vmatprep.subr.mxu0 0.0
    %108 = vmatpush1.msra.mxu0 0.0
    %109 = vmatprep.subr.mxu0 0.0
    %110 = vmatpush1.msra.mxu0 0.0
    %111 = vmatprep.subr.mxu0 0.0
    %112 = vmatpush1.msra.mxu0 0.0
    %113 = vmatprep.subr.mxu0 0.0
    %114 = vmatpush1.msra.mxu0 0.0
    %115 = vmatprep.subr.mxu0 0.0
    %116 = vmatpush1.msra.mxu0 0.0
    %117 = vmatprep.subr.mxu0 0.0
    %118 = vmatpush1.msra.mxu0 0.0
    %119 = vmatprep.subr.mxu0 0.0
    %120 = vmatpush1.msra.mxu0 0.0
    %121 = vmatprep.subr.mxu0 0.0
    %122 = vmatpush1.msra.mxu0 0.0
    %123 = vmatprep.mubr.f32.mxu0 0.0
    %124 = vmatmul.mubr.f32.gmra.mrb[0].mxu0 %v50
    %v125 = vpop.f32.mrb[0].mxu0
    %v126 = vadd.f32 %v46, %v125
    %v127 = vpop.f32.mrb[0].mxu0
    %128 = vmatprep.mubr.f32.mxu0 0.0
    %129 = vmatmul.mubr.f32.gmra.mrb[0].mxu0 %v53
    %v130 = vpop.f32.mrb[0].mxu0
    %v131 = vadd.f32 %v46, %v130
    %v132 = vpop.f32.mrb[0].mxu0
    %133 = vdwg.mxu0
    %v134 = vmax.f32 %v126, 0.0
    %v135 = vmax.f32 %v131, 0.0
    %v136 = vld [vmem:[#allocation2] sm:$0xff]
    %v137 = vld [vmem:[#allocation2 + $0x8] sm:$0xff]
    %v138 = vld [vmem:[#allocation2 + $0x10] sm:$0xff]
    %v139 = vld [vmem:[#allocation2 + $0x18] sm:$0xff]
    %v140 = vld [vmem:[#allocation2 + $0x20] sm:$0xff]
    %v141 = vld [vmem:[#allocation2 + $0x28] sm:$0xff]
    %v142 = vld [vmem:[#allocation2 + $0x30] sm:$0xff]
    %v143 = vld [vmem:[#allocation2 + $0x38] sm:$0xff]
    %v144 = vld [vmem:[#allocation2 + $0x40] sm:$0xff]
    %v145 = vld [vmem:[#allocation2 + $0x48] sm:$0xff]
    %v146 = vld [vmem:[#allocation2 + $0x50] sm:$0xff]
    %v147 = vld [vmem:[#allocation2 + $0x58] sm:$0xff]
    %v148 = vld [vmem:[#allocation2 + $0x60] sm:$0xff]
    %v149 = vld [vmem:[#allocation2 + $0x68] sm:$0xff]
    %v150 = vld [vmem:[#allocation2 + $0x70] sm:$0xff]
    %v151 = vld [vmem:[#allocation2 + $0x78] sm:$0xff]
    %v152 = vld [vmem:[%s4] sm:$0x1]
    %v154 = vlaneseq
    %v155 = vshrl.u32 %v154, 7
    %v156 = vsub.s32 0, %v155
    %v157 = vrot.slane %v152, %v156
    %159 = vmatprep.subr.mxu0 0.0
    %160 = vmatpush1.msra.mxu0 %v136
    %161 = vmatprep.subr.mxu0 0.0
    %162 = vmatpush1.msra.mxu0 %v137
    %163 = vmatprep.subr.mxu0 0.0
    %164 = vmatpush1.msra.mxu0 %v138
    %165 = vmatprep.subr.mxu0 0.0
    %166 = vmatpush1.msra.mxu0 %v139
    %167 = vmatprep.subr.mxu0 0.0
    %168 = vmatpush1.msra.mxu0 %v140
    %169 = vmatprep.subr.mxu0 0.0
    %170 = vmatpush1.msra.mxu0 %v141
    %171 = vmatprep.subr.mxu0 0.0
    %172 = vmatpush1.msra.mxu0 %v142
    %173 = vmatprep.subr.mxu0 0.0
    %174 = vmatpush1.msra.mxu0 %v143
    %175 = vmatprep.subr.mxu0 0.0
    %176 = vmatpush1.msra.mxu0 %v144
    %177 = vmatprep.subr.mxu0 0.0
    %178 = vmatpush1.msra.mxu0 %v145
    %179 = vmatprep.subr.mxu0 0.0
    %180 = vmatpush1.msra.mxu0 %v146
    %181 = vmatprep.subr.mxu0 0.0
    %182 = vmatpush1.msra.mxu0 %v147
    %183 = vmatprep.subr.mxu0 0.0
    %184 = vmatpush1.msra.mxu0 %v148
    %185 = vmatprep.subr.mxu0 0.0
    %186 = vmatpush1.msra.mxu0 %v149
    %187 = vmatprep.subr.mxu0 0.0
    %188 = vmatpush1.msra.mxu0 %v150
    %189 = vmatprep.subr.mxu0 0.0
    %190 = vmatpush1.msra.mxu0 %v151
    %191 = vmatprep.subr.mxu0 0.0
    %192 = vmatpush1.msra.mxu0 0.0
    %193 = vmatprep.subr.mxu0 0.0
    %194 = vmatpush1.msra.mxu0 0.0
    %195 = vmatprep.subr.mxu0 0.0
    %196 = vmatpush1.msra.mxu0 0.0
    %197 = vmatprep.subr.mxu0 0.0
    %198 = vmatpush1.msra.mxu0 0.0
    %199 = vmatprep.subr.mxu0 0.0
    %200 = vmatpush1.msra.mxu0 0.0
    %201 = vmatprep.subr.mxu0 0.0
    %202 = vmatpush1.msra.mxu0 0.0
    %203 = vmatprep.subr.mxu0 0.0
    %204 = vmatpush1.msra.mxu0 0.0
    %205 = vmatprep.subr.mxu0 0.0
    %206 = vmatpush1.msra.mxu0 0.0
    %207 = vmatprep.subr.mxu0 0.0
    %208 = vmatpush1.msra.mxu0 0.0
    %209 = vmatprep.subr.mxu0 0.0
    %210 = vmatpush1.msra.mxu0 0.0
    %211 = vmatprep.subr.mxu0 0.0
    %212 = vmatpush1.msra.mxu0 0.0
    %213 = vmatprep.subr.mxu0 0.0
    %214 = vmatpush1.msra.mxu0 0.0
    %215 = vmatprep.subr.mxu0 0.0
    %216 = vmatpush1.msra.mxu0 0.0
    %217 = vmatprep.subr.mxu0 0.0
    %218 = vmatpush1.msra.mxu0 0.0
    %219 = vmatprep.subr.mxu0 0.0
    %220 = vmatpush1.msra.mxu0 0.0
    %221 = vmatprep.subr.mxu0 0.0
    %222 = vmatpush1.msra.mxu0 0.0
    %223 = vmatprep.mubr.f32.mxu0 0.0
    %224 = vmatmul.mubr.f32.gmra.mrb[0].mxu0 %v134
    %v225 = vpop.f32.mrb[0].mxu0
    %v226 = vadd.f32 %v157, %v225
    %v227 = vpop.f32.mrb[0].mxu0
    %228 = vmatprep.mubr.f32.mxu0 0.0
    %229 = vmatmul.mubr.f32.gmra.mrb[0].mxu0 %v135
    %v230 = vpop.f32.mrb[0].mxu0
    %v231 = vadd.f32 %v157, %v230
    %v232 = vpop.f32.mrb[0].mxu0
    %233 = vdwg.mxu0
    %234 = vst [vmem:[#allocation5] sm:$0xff] %v226
    %235 = vst [vmem:[#allocation5 + $0x8] sm:$0xff] %v231
    %v236 = vlaneseq
    %v237 = vand.u32 %v236, 127
    %vm238 = vcmp.lt.s32.totalorder %v237, 2
    %v239 = vsel %vm238, %v226, -inf
    %v240 = vsel %vm238, %v231, -inf
    %241 = vmax.xlane.f32.xlu0 %v239
    %v242 = vpop.xlane.xlu0 %241
    %243 = vmax.xlane.f32.xlu0 %v240
    %v244 = vpop.xlane.xlu0 %243
    %v245 = vsub.f32 %v239, %v242
    %v246 = vsub.f32 %v240, %v244
    %v247 = vmul.f32 %v245, 1.442695
    %v248 = vpow.pop %v247
    %v249 = vmul.f32 %v246, 1.442695
    %v250 = vpow.pop %v249
    %v251 = vsel %vm238, %v248, 0.0
    %v252 = vsel %vm238, %v250, 0.0
    %253 = vadd.xlane.f32.xlu0 %v251
    %v254 = vpop.xlane.xlu0 %253
    %255 = vadd.xlane.f32.xlu0 %v252
    %v256 = vpop.xlane.xlu0 %255
    %v257 = vrcp.pop %v254
    %v258 = vrcp.pop %v256
    %v259 = vmul.f32 %v251, %v257
    %v260 = vmul.f32 %v252, %v258
    %261 = vst [vmem:[#allocation6] sm:$0xff] %v259
    %262 = vst [vmem:[#allocation6 + $0x8] sm:$0xff] %v260
    // Predicated region
    $region26: #{tpu_custom_call.1} parent=1 // pred_check
      _
    $region27: #{tpu_custom_call.1} parent=1 // pred_check_branch
      %264 = sbr.rel (0) target = $region29
    $region28: #{tpu_custom_call.1} parent=1 // pred_region
      %s266 = ssub.s32 256, 256
      %267 = vsyncadd [#allocation4], %s266
      %s268 = sshll.u32 [#allocation5], 4
      %s269 = int_to_ptr.vmem [resolvable:$true] %s268
      %274 = dma.vmem_to_hbm [thread:$0]  %s269, 256, %s5, [#allocation4], 128, 128, 8
    $region29: #{tpu_custom_call.1} parent=1 // pred_fallthru
      _
    // Predicated region
    $region30: #{tpu_custom_call.1} parent=1 // pred_check
      _
    $region31: #{tpu_custom_call.1} parent=1 // pred_check_branch
      %276 = sbr.rel (0) target = $region33
    $region32: #{tpu_custom_call.1} parent=1 // pred_region
      %s278 = ssub.s32 256, 256
      %279 = vsyncadd [#allocation7], %s278
      %s280 = sshll.u32 [#allocation6], 4
      %s281 = int_to_ptr.vmem [resolvable:$true] %s280
      %286 = dma.vmem_to_hbm [thread:$0]  %s281, 256, %s6, [#allocation7], 128, 128, 8
    $region33: #{tpu_custom_call.1} parent=1 // pred_fallthru
      _
    // Predicated region
    $region34: #{tpu_custom_call.1} parent=1 // pred_check
      _
    $region35: #{tpu_custom_call.1} parent=1 // pred_check_branch
      %288 = sbr.rel (0) target = $region37
    $region36: #{tpu_custom_call.1} parent=1 // pred_region
      %289 = dma.done [#allocation4], 256
    $region37: #{tpu_custom_call.1} parent=1 // pred_fallthru
      _
    // Predicated region
    $region38: #{tpu_custom_call.1} parent=1 // pred_check
      _
    $region39: #{tpu_custom_call.1} parent=1 // pred_check_branch
      %291 = sbr.rel (0) target = $region41
    $region40: #{tpu_custom_call.1} parent=1 // pred_region
      %292 = dma.done [#allocation7], 256
    $region41: #{tpu_custom_call.1} parent=1 // pred_fallthru
      _
    %293 = vsyncpa [#allocation3], 1
    %294 = vsyncpa [#allocation4], 1
    %295 = vsyncpa [#allocation7], 1

</llo_original>
